<compile_context>
chip_gen: v6e
topology: v6e:2x2x1
jax: 0.10.0
libtpu: 0.0.40
codegen_flags: <defaults>
</compile_context>

<pallas_src>
import functools
import math

import jax
import jax.numpy as jnp
from jax.experimental import pallas as pl
from jax.experimental.pallas import tpu as pltpu


P = 128  # lane-padded hidden / class feature width

# Streamed-pass packed-parameter layout (rows; all offsets 8-aligned).
_PPS_B_THIS = P            # this layer's bias
_PPS_B_NEXT = P + 8        # next (classifier) bias, final pass only
_PPS_ROWS = P + 16

# Fused-pass packed-parameter layout: W2 | W3 | Wc | biases (b1, b2, b3, bc).
_PPF_BIAS = 3 * P          # bias i lives at row _PPF_BIAS + 8 * i
_PPF_ROWS = 3 * P + 32


# --------------------------- hardware / VMEM budgeting -----------------------------
def _vmem_capacity_bytes():
    """Physical per-core VMEM: 64 MiB on v7x, 128 MiB on v5e/v6e."""
    try:
        cap = int(getattr(pltpu.get_tpu_info(), "vmem_capacity_bytes", 0))
        if cap > 0:
            return cap
    except Exception:
        pass
    try:
        kind = jax.devices()[0].device_kind.lower()
    except Exception:
        kind = ""
    if "v5" in kind or "v6" in kind:
        return 128 * 1024 * 1024
    return 64 * 1024 * 1024        # v7x / unknown: be conservative


def _vmem_budget_bytes():
    cap = _vmem_capacity_bytes()
    return min(int(cap * 0.85), cap - (4 << 20))


def _round_up(v, m):
    return -(-v // m) * m


def _stream_bytes(tm, n_pad):
    """VMEM estimate for one streamed pass at row tile tm."""
    return (2 * tm * n_pad * 2          # double-buffered bf16 A row slab
            + n_pad * P * 2             # resident activations (single-buffered)
            + _PPS_ROWS * P * 4         # resident packed params
            + 2 * 2 * tm * P * 2        # double-buffered bf16 outputs (final: 2 outputs)
            + 3 * tm * P * 4            # f32 agg / h temporaries
            + (2 << 20))                # slack


def _fused_bytes(n_pad):
    """VMEM estimate for the A-resident fused kernel."""
    return (n_pad * n_pad * 2           # resident bf16 A_hat
            + n_pad * P * 2             # resident Z1 = X @ W1
            + _PPF_ROWS * P * 4         # packed params
            + 2 * n_pad * P * 2         # bf16 outputs
            + 8 * n_pad * P * 4         # f32 intermediates (aggs, h1..h3, z2/z3)
            + (2 << 20))


def _fused_fits(n_pad, budget):
    return _fused_bytes(n_pad) <= int(0.9 * budget)


def _choose_row_block(n, budget):
    """Largest legal row tile (multiple of 16; >=128/256 preferred) that fits VMEM."""
    for tm in (2048, 1024, 512, 256, 128, 64, 32, 16):
        m = math.lcm(tm, P)
        n_pad = _round_up(n, m)
        if n_pad > max(2 * P, int(1.25 * n) + P):   # don't over-pad small graphs
            continue
        if _stream_bytes(tm, n_pad) <= budget:
            return tm, n_pad
    tm = 16
    return tm, _round_up(n, math.lcm(tm, P))


# ----------------------------------- kernels ---------------------------------------
def _gcn_fused_kernel(a_ref, z1_ref, pp_ref, out_ref, h_ref):
    # a_ref : (Np, Np)  bf16  resident normalized adjacency (loaded from HBM once)
    # z1_ref: (Np, P)   bf16  resident X @ W1 (zero-padded to 128 lanes)
    # pp_ref: (416, P)  f32   W2|W3|Wc at rows 0/128/256; b1,b2,b3,bc at 384/392/400/408
    a = a_ref[...]

    def hop(z, bias_idx):                     # tanh(A @ z + b), f32
        agg = jnp.dot(a, z, preferred_element_type=jnp.float32)
        return jnp.tanh(agg + pp_ref[_PPF_BIAS + 8 * bias_idx:_PPF_BIAS + 8 * bias_idx + 1, :])

    def mix(h, layer):                        # h @ W_next, bf16 for the next A-dot
        return jnp.dot(h, pp_ref[layer * P:(layer + 1) * P, :],
                       preferred_element_type=jnp.float32).astype(jnp.bfloat16)

    h1 = hop(z1_ref[...], 0)
    h2 = hop(mix(h1, 0), 1)
    h3 = hop(mix(h2, 1), 2)
    logits = (jnp.dot(h3, pp_ref[2 * P:3 * P, :], preferred_element_type=jnp.float32)
              + pp_ref[_PPF_BIAS + 24:_PPF_BIAS + 25, :])
    out_ref[...] = logits.astype(jnp.bfloat16)
    h_ref[...] = h3.astype(jnp.bfloat16)


def _gcn_layer_kernel(a_ref, zin_ref, pp_ref, *out_refs, final):
    # a_ref  : (TM, Np)  bf16  streamed, double-buffered row slab of A_hat
    # zin_ref: (Np, P)   bf16  resident input activations for this layer
    # pp_ref : (144, P)  f32   [0:128]=W_next, [128]=b_this, [136]=b_next (final only)
    agg = jnp.dot(a_ref[...], zin_ref[...], preferred_element_type=jnp.float32)
    h = jnp.tanh(agg + pp_ref[_PPS_B_THIS:_PPS_B_THIS + 1, :])
    nxt = jnp.dot(h, pp_ref[0:P, :], preferred_element_type=jnp.float32)
    if final:
        out_refs[0][...] = (nxt + pp_ref[_PPS_B_NEXT:_PPS_B_NEXT + 1, :]).astype(jnp.bfloat16)
        out_refs[1][...] = h.astype(jnp.bfloat16)
    else:
        out_refs[0][...] = nxt.astype(jnp.bfloat16)


# ---------------------------------- pallas_call runners -----------------------------
def _run_fused(a_bf16, z1, packed, budget):
    n_pad = a_bf16.shape[0]
    vmem = pl.BlockSpec(memory_space=pltpu.MemorySpace.VMEM)
    return pl.pallas_call(
        _gcn_fused_kernel,
        out_shape=(jax.ShapeDtypeStruct((n_pad, P), jnp.bfloat16),
                   jax.ShapeDtypeStruct((n_pad, P), jnp.bfloat16)),
        in_specs=[vmem, vmem, vmem],
        out_specs=(vmem, vmem),
        compiler_params=pltpu.CompilerParams(vmem_limit_bytes=budget),
    )(a_bf16, z1, packed)


def _run_layer(a_bf16, z_in, packed, *, tm, budget, final=False):
    n_pad = a_bf16.shape[0]
    grid = (n_pad // tm,)
    kernel = functools.partial(_gcn_layer_kernel, final=final)
    if final:
        out_shape = (jax.ShapeDtypeStruct((n_pad, P), jnp.bfloat16),
                     jax.ShapeDtypeStruct((n_pad, P), jnp.bfloat16))
        out_specs = (pl.BlockSpec((tm, P), lambda i: (i, 0)),
                     pl.BlockSpec((tm, P), lambda i: (i, 0)))
    else:
        out_shape = jax.ShapeDtypeStruct((n_pad, P), jnp.bfloat16)
        out_specs = pl.BlockSpec((tm, P), lambda i: (i, 0))

    def call(single_buffer_resident):
        resident_kw = ({"pipeline_mode": pl.Buffered(1)} if single_buffer_resident else {})
        in_specs = [
            pl.BlockSpec((tm, n_pad), lambda i: (i, 0)),                    # A slab: streamed
            pl.BlockSpec((n_pad, P), lambda i: (0, 0), **resident_kw),      # activations: resident
            pl.BlockSpec((_PPS_ROWS, P), lambda i: (0, 0), **resident_kw),  # params: resident
        ]
        return pl.pallas_call(
            kernel, grid=grid, in_specs=in_specs, out_specs=out_specs, out_shape=out_shape,
            compiler_params=pltpu.CompilerParams(
                dimension_semantics=("parallel",),      # row blocks independent -> megacore
                vmem_limit_bytes=budget),
        )(a_bf16, z_in, packed)

    try:
        return call(True)       # single-buffer revisited operands (frees VMEM for bigger slabs)
    except Exception:
        # Version-compat fallback: default double-buffering is correct, just uses more VMEM.
        return call(False)


# ---------------------------------- param packing -----------------------------------
def _pack_stream_params(b_this, w_next, b_next=None):
    pp = jnp.zeros((_PPS_ROWS, P), jnp.float32)
    pp = pp.at[:w_next.shape[0], :w_next.shape[1]].set(w_next.astype(jnp.float32))
    pp = pp.at[_PPS_B_THIS, :b_this.shape[-1]].set(b_this.reshape(-1).astype(jnp.float32))
    if b_next is not None:
        pp = pp.at[_PPS_B_NEXT, :b_next.shape[-1]].set(b_next.reshape(-1).astype(jnp.float32))
    return pp


def _pack_fused_params(weights, biases):
    pp = jnp.zeros((_PPF_ROWS, P), jnp.float32)
    for l, w in enumerate(weights):                     # W2, W3, Wc
        pp = pp.at[l * P:l * P + w.shape[0], :w.shape[1]].set(w.astype(jnp.float32))
    for i, b in enumerate(biases):                      # b1, b2, b3, bc
        pp = pp.at[_PPF_BIAS + 8 * i, :b.shape[-1]].set(b.reshape(-1).astype(jnp.float32))
    return pp


def _pad2(x, rows, cols):
    out = jnp.zeros((rows, cols), x.dtype)
    return out.at[:x.shape[0], :x.shape[1]].set(x)


# ---------------------------------- forward wrapper ---------------------------------
def gcn_forward(a_norm, x, params, *, force_streamed=False, row_block=None):
    """params = (w1, b1, w2, b2, w3, b3, wc, bc); biases shaped (1, d)."""
    w1, b1, w2, b2, w3, b3, wc, bc = params
    n = x.shape[0]
    c = wc.shape[1]
    dims = (w1.shape[1], w2.shape[0], w2.shape[1], w3.shape[0], w3.shape[1],
            wc.shape[0], wc.shape[1])
    assert max(dims) <= P, "hidden/class widths must fit the 128-lane packed layout"

    budget = _vmem_budget_bytes()

    # Layer-1 associativity: A @ (X @ W1) == (A @ X) @ W1 -> precompute the tiny X @ W1
    # in XLA so every Pallas pass has an identical body (no raw-feature resident buffer).
    xw1 = x.astype(jnp.float32) @ w1.astype(jnp.float32)          # (n, h1), h1 <= 128

    n_pad_fused = _round_up(n, P)
    if (not force_streamed) and _fused_fits(n_pad_fused, budget):
        # ---- A-resident fused fast path: one kernel, A read from HBM exactly once ----
        n_pad = n_pad_fused
        a_bf16 = _pad2(a_norm, n_pad, n_pad).astype(jnp.bfloat16)
        z1 = _pad2(xw1, n_pad, P).astype(jnp.bfloat16)
        pp = _pack_fused_params((w2, w3, wc), (b1, b2, b3, bc))
        logits_pad, h_pad = _run_fused(a_bf16, z1, pp, budget)
    else:
        # ---- streamed 3-pass path for graphs whose A_hat does not fit VMEM -----------
        if row_block is not None:
            tm = int(row_block)
            assert tm % 16 == 0, "row_block must be a multiple of 16 (bf16 sublane packing)"
            n_pad = _round_up(n, math.lcm(tm, P))
        else:
            tm, n_pad = _choose_row_block(n, budget)
        a_bf16 = _pad2(a_norm, n_pad, n_pad).astype(jnp.bfloat16)
        z1 = _pad2(xw1, n_pad, P).astype(jnp.bfloat16)
        pp1 = _pack_stream_params(b1, w2)
        pp2 = _pack_stream_params(b2, w3)
        pp3 = _pack_stream_params(b3, wc, bc)
        z2 = _run_layer(a_bf16, z1, pp1, tm=tm, budget=budget)                  # layer 1 -> Z2
        z3 = _run_layer(a_bf16, z2, pp2, tm=tm, budget=budget)                  # layer 2 -> Z3
        logits_pad, h_pad = _run_layer(a_bf16, z3, pp3, tm=tm, budget=budget,
                                       final=True)                             # layer 3 + classifier

    return (logits_pad[:n, :c].astype(jnp.float32),
            h_pad[:n, :w3.shape[1]].astype(jnp.float32))


# ---------------------------------- plain-JAX glue ----------------------------------
def normalized_adjacency(edge_index, num_nodes):
    """Dense D^-1/2 (A + I) D^-1/2 from a (2, E) edge_index (PyG gcn_norm semantics;
    assumes edge_index carries no explicit self-loops)."""
    src, dst = edge_index[0], edge_index[1]
    a = jnp.zeros((num_nodes, num_nodes), jnp.float32)
    a = a.at[dst, src].add(1.0)
    a = a + jnp.eye(num_nodes, dtype=jnp.float32)
    deg = a.sum(axis=1)
    d_inv_sqrt = jnp.where(deg > 0, 1.0 / jnp.sqrt(deg), 0.0)
    return a * d_inv_sqrt[:, None] * d_inv_sqrt[None, :]


def glorot(key, fan_in, fan_out):
    bound = jnp.sqrt(6.0 / (fan_in + fan_out))
    return jax.random.uniform(key, (fan_in, fan_out), jnp.float32, -bound, bound)


def init_params(key, num_features, num_classes):
    # Deterministic synthetic init (shapes match GCN.__init__); not a checkpoint load.
    ks = jax.random.split(key, 5)
    w1 = glorot(ks[0], num_features, 4); b1 = jnp.zeros((1, 4), jnp.float32)
    w2 = glorot(ks[1], 4, 4);            b2 = jnp.zeros((1, 4), jnp.float32)
    w3 = glorot(ks[2], 4, 2);            b3 = jnp.zeros((1, 2), jnp.float32)
    wc = glorot(ks[3], 2, num_classes)
    bc = jax.random.uniform(ks[4], (1, num_classes), jnp.float32,
                            -1.0 / jnp.sqrt(2.0), 1.0 / jnp.sqrt(2.0))
    return (w1, b1, w2, b2, w3, b3, wc, bc)


def gcn_reference(a, x, params):
    """Pure-JAX f32 reference of the original forward pass."""
    w1, b1, w2, b2, w3, b3, wc, bc = params
    h = jnp.tanh(a @ (x @ w1) + b1)
    h = jnp.tanh(a @ (h @ w2) + b2)
    h = jnp.tanh(a @ (h @ w3) + b3)
    return h @ wc + bc, h


def _build_graph(key_x, key_e, n, num_features, num_undirected_edges):
    x = jax.random.normal(key_x, (n, num_features), jnp.float32)
    pairs = jax.random.randint(key_e, (2, num_undirected_edges), 0, n)
    edge_index = jnp.concatenate([pairs, pairs[::-1]], axis=1)   # both directions
    return x, edge_index


# -------------------------------------- main ----------------------------------------
if __name__ == "__main__":
    key = jax.random.PRNGKey(0)
    k1x, k1e, k1p, k2x, k2e, k2p = jax.random.split(key, 6)

    # --- Test 1: demo-size graph -> A-resident fused single-kernel fast path ---------
    N1, F1, C1 = 64, 8, 4
    x1, ei1 = _build_graph(k1x, k1e, N1, F1, 96)
    a1 = normalized_adjacency(ei1, N1)
    p1 = init_params(k1p, F1, C1)
    out1, h1 = gcn_forward(a1, x1, p1)
    jax.block_until_ready((out1, h1))
    ro1, rh1 = gcn_reference(a1, x1, p1)
    assert out1.shape == (N1, C1) and h1.shape == (N1, 2)
    assert bool(jnp.all(jnp.isfinite(out1))) and bool(jnp.all(jnp.isfinite(h1)))
    e_out1 = float(jnp.max(jnp.abs(out1 - ro1)))
    e_h1 = float(jnp.max(jnp.abs(h1 - rh1)))
    assert e_out1 < 0.1 and e_h1 < 0.1, (e_out1, e_h1)      # bf16-A tolerance

    # --- Test 2: larger graph, forced streamed 3-pass path (multi-step parallel grid) -
    N2, F2, C2 = 300, 12, 3
    x2, ei2 = _build_graph(k2x, k2e, N2, F2, 600)
    a2 = normalized_adjacency(ei2, N2)
    p2 = init_params(k2p, F2, C2)
    out2, h2 = gcn_forward(a2, x2, p2, force_streamed=True)
    jax.block_until_ready((out2, h2))
    ro2, rh2 = gcn_reference(a2, x2, p2)
    assert out2.shape == (N2, C2) and h2.shape == (N2, 2)
    assert bool(jnp.all(jnp.isfinite(out2))) and bool(jnp.all(jnp.isfinite(h2)))
    e_out2 = float(jnp.max(jnp.abs(out2 - ro2)))
    e_h2 = float(jnp.max(jnp.abs(h2 - rh2)))
    assert e_out2 < 0.1 and e_h2 < 0.1, (e_out2, e_h2)

    print("KERNEL_OK")
</pallas_src>

<mosaic_0001>
module attributes {stable_mosaic.version = 11 : i64} {
  func.func @_gcn_fused_kernel(%arg0: memref<128x128xbf16, #tpu.memory_space<vmem>>, %arg1: memref<128x128xbf16, #tpu.memory_space<vmem>>, %arg2: memref<416x128xf32, #tpu.memory_space<vmem>>, %arg3: memref<128x128xbf16, #tpu.memory_space<vmem>>, %arg4: memref<128x128xbf16, #tpu.memory_space<vmem>>) attributes {dimension_semantics = [], scalar_prefetch = 0 : i64, scratch_operands = 0 : i64, tpu.core_type = #tpu.core_type<tc>} {
    %c0 = arith.constant 0 : index
    %c0_0 = arith.constant 0 : index
    %0 = vector.load %arg0[%c0, %c0_0] : memref<128x128xbf16, #tpu.memory_space<vmem>>, vector<128x128xbf16>
    %c0_1 = arith.constant 0 : index
    %c0_2 = arith.constant 0 : index
    %1 = vector.load %arg1[%c0_1, %c0_2] : memref<128x128xbf16, #tpu.memory_space<vmem>>, vector<128x128xbf16>
    %cst = arith.constant dense<0.000000e+00> : vector<128x128xf32>
    %2 = tpu.matmul %0, %1, %cst {dimension_numbers = #tpu.dot_dimension_numbers<[1], [0], [0], [1], [0, 0, 1, 1], [], []>} : vector<128x128xbf16>, vector<128x128xbf16>, vector<128x128xf32> -> vector<128x128xf32>
    %c384 = arith.constant 384 : index
    %c0_3 = arith.constant 0 : index
    %3 = vector.load %arg2[%c384, %c0_3] : memref<416x128xf32, #tpu.memory_space<vmem>>, vector<1x128xf32>
    %4 = vector.broadcast %3 : vector<1x128xf32> to vector<128x128xf32>
    %5 = arith.addf %2, %4 : vector<128x128xf32>
    %6 = math.tanh %5 : vector<128x128xf32>
    %c0_4 = arith.constant 0 : index
    %c0_5 = arith.constant 0 : index
    %7 = vector.load %arg2[%c0_4, %c0_5] : memref<416x128xf32, #tpu.memory_space<vmem>>, vector<128x128xf32>
    %cst_6 = arith.constant dense<0.000000e+00> : vector<128x128xf32>
    %8 = tpu.matmul %6, %7, %cst_6 {dimension_numbers = #tpu.dot_dimension_numbers<[1], [0], [0], [1], [0, 0, 1, 1], [], []>} : vector<128x128xf32>, vector<128x128xf32>, vector<128x128xf32> -> vector<128x128xf32>
    %9 = arith.truncf %8 : vector<128x128xf32> to vector<128x128xbf16>
    %cst_7 = arith.constant dense<0.000000e+00> : vector<128x128xf32>
    %10 = tpu.matmul %0, %9, %cst_7 {dimension_numbers = #tpu.dot_dimension_numbers<[1], [0], [0], [1], [0, 0, 1, 1], [], []>} : vector<128x128xbf16>, vector<128x128xbf16>, vector<128x128xf32> -> vector<128x128xf32>
    %c392 = arith.constant 392 : index
    %c0_8 = arith.constant 0 : index
    %11 = vector.load %arg2[%c392, %c0_8] : memref<416x128xf32, #tpu.memory_space<vmem>>, vector<1x128xf32>
    %12 = vector.broadcast %11 : vector<1x128xf32> to vector<128x128xf32>
    %13 = arith.addf %10, %12 : vector<128x128xf32>
    %14 = math.tanh %13 : vector<128x128xf32>
    %c128 = arith.constant 128 : index
    %c0_9 = arith.constant 0 : index
    %15 = vector.load %arg2[%c128, %c0_9] : memref<416x128xf32, #tpu.memory_space<vmem>>, vector<128x128xf32>
    %cst_10 = arith.constant dense<0.000000e+00> : vector<128x128xf32>
    %16 = tpu.matmul %14, %15, %cst_10 {dimension_numbers = #tpu.dot_dimension_numbers<[1], [0], [0], [1], [0, 0, 1, 1], [], []>} : vector<128x128xf32>, vector<128x128xf32>, vector<128x128xf32> -> vector<128x128xf32>
    %17 = arith.truncf %16 : vector<128x128xf32> to vector<128x128xbf16>
    %cst_11 = arith.constant dense<0.000000e+00> : vector<128x128xf32>
    %18 = tpu.matmul %0, %17, %cst_11 {dimension_numbers = #tpu.dot_dimension_numbers<[1], [0], [0], [1], [0, 0, 1, 1], [], []>} : vector<128x128xbf16>, vector<128x128xbf16>, vector<128x128xf32> -> vector<128x128xf32>
    %c400 = arith.constant 400 : index
    %c0_12 = arith.constant 0 : index
    %19 = vector.load %arg2[%c400, %c0_12] : memref<416x128xf32, #tpu.memory_space<vmem>>, vector<1x128xf32>
    %20 = vector.broadcast %19 : vector<1x128xf32> to vector<128x128xf32>
    %21 = arith.addf %18, %20 : vector<128x128xf32>
    %22 = math.tanh %21 : vector<128x128xf32>
    %c256 = arith.constant 256 : index
    %c0_13 = arith.constant 0 : index
    %23 = vector.load %arg2[%c256, %c0_13] : memref<416x128xf32, #tpu.memory_space<vmem>>, vector<128x128xf32>
    %cst_14 = arith.constant dense<0.000000e+00> : vector<128x128xf32>
    %24 = tpu.matmul %22, %23, %cst_14 {dimension_numbers = #tpu.dot_dimension_numbers<[1], [0], [0], [1], [0, 0, 1, 1], [], []>} : vector<128x128xf32>, vector<128x128xf32>, vector<128x128xf32> -> vector<128x128xf32>
    %c408 = arith.constant 408 : index
    %c0_15 = arith.constant 0 : index
    %25 = vector.load %arg2[%c408, %c0_15] : memref<416x128xf32, #tpu.memory_space<vmem>>, vector<1x128xf32>
    %26 = vector.broadcast %25 : vector<1x128xf32> to vector<128x128xf32>
    %27 = arith.addf %24, %26 : vector<128x128xf32>
    %28 = arith.truncf %27 : vector<128x128xf32> to vector<128x128xbf16>
    %c0_16 = arith.constant 0 : index
    %c0_17 = arith.constant 0 : index
    %29 = vector.load %arg3[%c0_16, %c0_17] : memref<128x128xbf16, #tpu.memory_space<vmem>>, vector<128x128xbf16>
    tpu.vector_store %arg3[%c0_16, %c0_17], %28 {strides = array<i32>} : memref<128x128xbf16, #tpu.memory_space<vmem>>, vector<128x128xbf16>,
    %30 = arith.truncf %22 : vector<128x128xf32> to vector<128x128xbf16>
    %c0_18 = arith.constant 0 : index
    %c0_19 = arith.constant 0 : index
    %31 = vector.load %arg4[%c0_18, %c0_19] : memref<128x128xbf16, #tpu.memory_space<vmem>>, vector<128x128xbf16>
    tpu.vector_store %arg4[%c0_18, %c0_19], %30 {strides = array<i32>} : memref<128x128xbf16, #tpu.memory_space<vmem>>, vector<128x128xbf16>,
    return
  }
}

</mosaic_0001>

<llo_original>
// kernel: tpu_custom_call.1
$region0: #{tpu_custom_call.1}
  #allocation0 [shape = 'u32[]', space=smem, size = 0x4, offset = 0x4, fixed_abs, tag = 'smem constant byte address 0x4 - core index']
  #allocation1 [shape = 'u32[144,128]{1,0:T(1,128)}', space=vmem, size = 0x12000, scoped, tag = 'internal scratch']
  %s0 = inlined_call_operand.hbm [shape: bf16[128,128], index: 0, kind: input, shape index: {}]
  %s1 = inlined_call_operand.hbm [shape: bf16[128,128], index: 1, kind: input, shape index: {}]
  %s2 = inlined_call_operand.hbm [shape: f32[416,128], index: 2, kind: input, shape index: {}]
  %s3 = inlined_call_operand.hbm [shape: bf16[128,128], index: 3, kind: output, shape index: {0}]
  %s4 = inlined_call_operand.hbm [shape: bf16[128,128], index: 4, kind: output, shape index: {1}]
  %5 = xla_tuple %s3, %s4
  %s6 = sld [smem:[#allocation0]]
  $region42: #{tpu_custom_call.1} parent=0
    _
  %s8 = ssub.s32 1, %s6
  %s9 = scalar_select 0, %s8, %s6
  $region1: #{tpu_custom_call.1} parent=0
    #allocation2 [shape = 'u8[32768]{0}', space=vmem, size = 0x8000, scoped, tag = 'input window, operand 0, single buffered']
    #allocation3 [shape = 's32[1]{0}', space=sflag, size = 0x4, scoped, tag = 'scoped memory for tpu_custom_call.1']
    #allocation4 [shape = 's32[1]{0}', space=sflag, size = 0x4, scoped, tag = 'scoped memory for tpu_custom_call.1']
    #allocation5 [shape = 'u8[32768]{0}', space=vmem, size = 0x8000, scoped, tag = 'input window, operand 1, single buffered']
    #allocation6 [shape = 's32[1]{0}', space=sflag, size = 0x4, scoped, tag = 'scoped memory for tpu_custom_call.1']
    #allocation7 [shape = 'u8[212992]{0}', space=vmem, size = 0x34000, scoped, tag = 'input window, operand 2, single buffered']
    #allocation8 [shape = 'u8[32768]{0}', space=vmem, size = 0x8000, scoped, tag = 'output window, operand 0, single buffered']
    #allocation9 [shape = 'u8[32768]{0}', space=vmem, size = 0x8000, scoped, tag = 'output window, operand 1, single buffered']
    #allocation10 [shape = 's32[1]{0}', space=sflag, size = 0x4, scoped, tag = 'scoped memory for tpu_custom_call.1']
    %10 = vsyncpa [#allocation3], 0
    %11 = vsyncpa [#allocation6], 0
    %12 = vsyncpa [#allocation4], 0
    %13 = vsyncpa [#allocation10], 0
    // Predicated region
    $region2: #{tpu_custom_call.1} parent=1 // pred_check
      _
    $region3: #{tpu_custom_call.1} parent=1 // pred_check_branch
      %15 = sbr.rel (0) target = $region5
    $region4: #{tpu_custom_call.1} parent=1 // pred_region
      %s17 = ssub.s32 1024, 1024
      %18 = vsyncadd [#allocation3], %s17
      %s19 = sshll.u32 [#allocation2], 4
      %s20 = int_to_ptr.vmem [resolvable:$true] %s19
      %25 = dma.hbm_to_vmem [thread:$0]  %s0, 1024, %s20, [#allocation3], 64, 64, 4
    $region5: #{tpu_custom_call.1} parent=1 // pred_fallthru
      _
    // Predicated region
    $region6: #{tpu_custom_call.1} parent=1 // pred_check
      _
    $region7: #{tpu_custom_call.1} parent=1 // pred_check_branch
      %27 = sbr.rel (0) target = $region9
    $region8: #{tpu_custom_call.1} parent=1 // pred_region
      %s29 = ssub.s32 1024, 1024
      %30 = vsyncadd [#allocation6], %s29
      %s31 = sshll.u32 [#allocation5], 4
      %s32 = int_to_ptr.vmem [resolvable:$true] %s31
      %37 = dma.hbm_to_vmem [thread:$0]  %s1, 1024, %s32, [#allocation6], 64, 64, 4
    $region9: #{tpu_custom_call.1} parent=1 // pred_fallthru
      _
    // Predicated region
    $region10: #{tpu_custom_call.1} parent=1 // pred_check
      _
    $region11: #{tpu_custom_call.1} parent=1 // pred_check_branch
      %39 = sbr.rel (0) target = $region13
    $region12: #{tpu_custom_call.1} parent=1 // pred_region
      %s41 = ssub.s32 6656, 6656
      %42 = vsyncadd [#allocation6], %s41
      %s43 = sshll.u32 [#allocation7], 4
      %s44 = int_to_ptr.vmem [resolvable:$true] %s43
      %49 = dma.hbm_to_vmem [thread:$0]  %s2, 6656, %s44, [#allocation6], 128, 128, 8
    $region13: #{tpu_custom_call.1} parent=1 // pred_fallthru
      _
    // Predicated region
    $region14: #{tpu_custom_call.1} parent=1 // pred_check
      _
    $region15: #{tpu_custom_call.1} parent=1 // pred_check_branch
      %51 = sbr.rel (0) target = $region17
    $region16: #{tpu_custom_call.1} parent=1 // pred_region
      %52 = dma.done [#allocation3], 1024
    $region17: #{tpu_custom_call.1} parent=1 // pred_fallthru
      _
    // Predicated region
    $region18: #{tpu_custom_call.1} parent=1 // pred_check
      _
    $region19: #{tpu_custom_call.1} parent=1 // pred_check_branch
      %54 = sbr.rel (0) target = $region21
    $region20: #{tpu_custom_call.1} parent=1 // pred_region
      %55 = dma.done [#allocation6], 1024
    $region21: #{tpu_custom_call.1} parent=1 // pred_fallthru
      _
    // Predicated region
    $region22: #{tpu_custom_call.1} parent=1 // pred_check
      _
    $region23: #{tpu_custom_call.1} parent=1 // pred_check_branch
      %57 = sbr.rel (0) target = $region25
    $region24: #{tpu_custom_call.1} parent=1 // pred_region
      %58 = dma.done [#allocation6], 6656
    $region25: #{tpu_custom_call.1} parent=1 // pred_fallthru
      _
    %v60 = vld [vmem:[#allocation2] sm:$0xf]
    %v61 = vld [vmem:[#allocation2 + $0x4] sm:$0xf]
    %v62 = vld [vmem:[#allocation2 + $0x8] sm:$0xf]
    %v63 = vld [vmem:[#allocation2 + $0xc] sm:$0xf]
    %v64 = vld [vmem:[#allocation2 + $0x10] sm:$0xf]
    %v65 = vld [vmem:[#allocation2 + $0x14] sm:$0xf]
    %v66 = vld [vmem:[#allocation2 + $0x18] sm:$0xf]
    %v67 = vld [vmem:[#allocation2 + $0x1c] sm:$0xf]
    %v68 = vld [vmem:[#allocation2 + $0x20] sm:$0xf]
    %v69 = vld [vmem:[#allocation2 + $0x24] sm:$0xf]
    %v70 = vld [vmem:[#allocation2 + $0x28] sm:$0xf]
    %v71 = vld [vmem:[#allocation2 + $0x2c] sm:$0xf]
    %v72 = vld [vmem:[#allocation2 + $0x30] sm:$0xf]
    %v73 = vld [vmem:[#allocation2 + $0x34] sm:$0xf]
    %v74 = vld [vmem:[#allocation2 + $0x38] sm:$0xf]
    %v75 = vld [vmem:[#allocation2 + $0x3c] sm:$0xf]
    %v76 = vld [vmem:[#allocation5] sm:$0xf]
    %v77 = vld [vmem:[#allocation5 + $0x4] sm:$0xf]
    %v78 = vld [vmem:[#allocation5 + $0x8] sm:$0xf]
    %v79 = vld [vmem:[#allocation5 + $0xc] sm:$0xf]
    %v80 = vld [vmem:[#allocation5 + $0x10] sm:$0xf]
    %v81 = vld [vmem:[#allocation5 + $0x14] sm:$0xf]
    %v82 = vld [vmem:[#allocation5 + $0x18] sm:$0xf]
    %v83 = vld [vmem:[#allocation5 + $0x1c] sm:$0xf]
    %v84 = vld [vmem:[#allocation5 + $0x20] sm:$0xf]
    %v85 = vld [vmem:[#allocation5 + $0x24] sm:$0xf]
    %v86 = vld [vmem:[#allocation5 + $0x28] sm:$0xf]
    %v87 = vld [vmem:[#allocation5 + $0x2c] sm:$0xf]
    %v88 = vld [vmem:[#allocation5 + $0x30] sm:$0xf]
    %v89 = vld [vmem:[#allocation5 + $0x34] sm:$0xf]
    %v90 = vld [vmem:[#allocation5 + $0x38] sm:$0xf]
    %v91 = vld [vmem:[#allocation5 + $0x3c] sm:$0xf]
    %v92 = vld [vmem:[#allocation7 + $0x180] sm:$0x1]
    %v93 = vlaneseq
    %v94 = vshrl.u32 %v93, 7
    %v95 = vsub.s32 0, %v94
    %v96 = vrot.slane %v92, %v95
    %v113 = vunpack.c.l.b16 %v60
    %v114 = vunpack.c.l.b16 %v61
    %v115 = vunpack.c.l.b16 %v62
    %v116 = vunpack.c.l.b16 %v63
    %v117 = vunpack.c.l.b16 %v64
    %v118 = vunpack.c.l.b16 %v65
    %v119 = vunpack.c.l.b16 %v66
    %v120 = vunpack.c.l.b16 %v67
    %v121 = vunpack.c.l.b16 %v68
    %v122 = vunpack.c.l.b16 %v69
    %v123 = vunpack.c.l.b16 %v70
    %v124 = vunpack.c.l.b16 %v71
    %v125 = vunpack.c.l.b16 %v72
    %v126 = vunpack.c.l.b16 %v73
    %v127 = vunpack.c.l.b16 %v74
    %v128 = vunpack.c.l.b16 %v75
    %v129 = vpack.c.b16 %v114, %v113
    %v130 = vpack.c.b16 %v116, %v115
    %v131 = vpack.c.b16 %v118, %v117
    %v132 = vpack.c.b16 %v120, %v119
    %v133 = vpack.c.b16 %v122, %v121
    %v134 = vpack.c.b16 %v124, %v123
    %v135 = vpack.c.b16 %v126, %v125
    %v136 = vpack.c.b16 %v128, %v127
    %v161 = vunpack.c.l.b16 %v76
    %v162 = vunpack.c.l.b16 %v77
    %v163 = vunpack.c.l.b16 %v78
    %v164 = vunpack.c.l.b16 %v79
    %v165 = vunpack.c.l.b16 %v80
    %v166 = vunpack.c.l.b16 %v81
    %v167 = vunpack.c.l.b16 %v82
    %v168 = vunpack.c.l.b16 %v83
    %v169 = vunpack.c.l.b16 %v84
    %v170 = vunpack.c.l.b16 %v85
    %v171 = vunpack.c.l.b16 %v86
    %v172 = vunpack.c.l.b16 %v87
    %v173 = vunpack.c.l.b16 %v88
    %v174 = vunpack.c.l.b16 %v89
    %v175 = vunpack.c.l.b16 %v90
    %v176 = vunpack.c.l.b16 %v91
    %v177 = vpack.c.b16 %v162, %v161
    %v178 = vpack.c.b16 %v164, %v163
    %v179 = vpack.c.b16 %v166, %v165
    %v180 = vpack.c.b16 %v168, %v167
    %v181 = vpack.c.b16 %v170, %v169
    %v182 = vpack.c.b16 %v172, %v171
    %v183 = vpack.c.b16 %v174, %v173
    %v184 = vpack.c.b16 %v176, %v175
    %193 = vmatprep.subr.bf16.mxu0 0
    %194 = vmatpush1.bf16.msra.mxu0 %v184
    %195 = vmatprep.subr.bf16.mxu0 0
    %196 = vmatpush1.bf16.msra.mxu0 %v183
    %197 = vmatprep.subr.bf16.mxu0 0
    %198 = vmatpush1.bf16.msra.mxu0 %v182
    %199 = vmatprep.subr.bf16.mxu0 0
    %200 = vmatpush1.bf16.msra.mxu0 %v181
    %201 = vmatprep.subr.bf16.mxu0 0
    %202 = vmatpush1.bf16.msra.mxu0 %v180
    %203 = vmatprep.subr.bf16.mxu0 0
    %204 = vmatpush1.bf16.msra.mxu0 %v179
    %205 = vmatprep.subr.bf16.mxu0 0
    %206 = vmatpush1.bf16.msra.mxu0 %v178
    %207 = vmatprep.subr.bf16.mxu0 0
    %208 = vmatpush1.bf16.msra.mxu0 %v177
    %209 = vmatprep.subr.bf16.mxu0 0
    %210 = vmatpush2.bf16.msra.mxu0 0
    %211 = vmatprep.subr.bf16.mxu0 0
    %212 = vmatpush2.bf16.msra.mxu0 0
    %213 = vmatprep.subr.bf16.mxu0 0
    %214 = vmatpush2.bf16.msra.mxu0 0
    %215 = vmatprep.subr.bf16.mxu0 0
    %216 = vmatpush2.bf16.msra.mxu0 0
    %217 = vmatprep.subr.bf16.mxu0 0
    %218 = vmatpush2.bf16.msra.mxu0 0
    %219 = vmatprep.subr.bf16.mxu0 0
    %220 = vmatpush2.bf16.msra.mxu0 0
    %221 = vmatprep.subr.bf16.mxu0 0
    %222 = vmatpush2.bf16.msra.mxu0 0
    %223 = vmatprep.subr.bf16.mxu0 0
    %224 = vmatpush2.bf16.msra.mxu0 0
    %225 = vmatprep.mubr.bf16.mxu0 0
    %226 = vmatmul.mubr.bf16.gmra.mxu0 %v129
    %v227 = vpop.f32.mrf.mxu0
    %v228 = vadd.f32 %v96, %v227
    %v229 = vpop.f32.mrf.mxu0
    %v230 = vpop.f32.mrf.mxu0
    %v231 = vadd.f32 %v96, %v230
    %v232 = vpop.f32.mrf.mxu0
    %233 = vmatprep.mubr.bf16.mxu0 0
    %234 = vmatmul.mubr.bf16.gmra.mxu0 %v130
    %v235 = vpop.f32.mrf.mxu0
    %v236 = vadd.f32 %v96, %v235
    %v237 = vpop.f32.mrf.mxu0
    %v238 = vpop.f32.mrf.mxu0
    %v239 = vadd.f32 %v96, %v238
    %v240 = vpop.f32.mrf.mxu0
    %241 = vmatprep.mubr.bf16.mxu0 0
    %242 = vmatmul.mubr.bf16.gmra.mxu0 %v131
    %v243 = vpop.f32.mrf.mxu0
    %v244 = vadd.f32 %v96, %v243
    %v245 = vpop.f32.mrf.mxu0
    %v246 = vpop.f32.mrf.mxu0
    %v247 = vadd.f32 %v96, %v246
    %v248 = vpop.f32.mrf.mxu0
    %249 = vmatprep.mubr.bf16.mxu0 0
    %250 = vmatmul.mubr.bf16.gmra.mxu0 %v132
    %v251 = vpop.f32.mrf.mxu0
    %v252 = vadd.f32 %v96, %v251
    %v253 = vpop.f32.mrf.mxu0
    %v254 = vpop.f32.mrf.mxu0
    %v255 = vadd.f32 %v96, %v254
    %v256 = vpop.f32.mrf.mxu0
    %257 = vmatprep.mubr.bf16.mxu0 0
    %258 = vmatmul.mubr.bf16.gmra.mxu0 %v133
    %v259 = vpop.f32.mrf.mxu0
    %v260 = vadd.f32 %v96, %v259
    %v261 = vpop.f32.mrf.mxu0
    %v262 = vpop.f32.mrf.mxu0
    %v263 = vadd.f32 %v96, %v262
    %v264 = vpop.f32.mrf.mxu0
    %265 = vmatprep.mubr.bf16.mxu0 0
    %266 = vmatmul.mubr.bf16.gmra.mxu0 %v134
    %v267 = vpop.f32.mrf.mxu0
    %v268 = vadd.f32 %v96, %v267
    %v269 = vpop.f32.mrf.mxu0
    %v270 = vpop.f32.mrf.mxu0
    %v271 = vadd.f32 %v96, %v270
    %v272 = vpop.f32.mrf.mxu0
    %273 = vmatprep.mubr.bf16.mxu0 0
    %274 = vmatmul.mubr.bf16.gmra.mxu0 %v135
    %v275 = vpop.f32.mrf.mxu0
    %v276 = vadd.f32 %v96, %v275
    %v277 = vpop.f32.mrf.mxu0
    %v278 = vpop.f32.mrf.mxu0
    %v279 = vadd.f32 %v96, %v278
    %v280 = vpop.f32.mrf.mxu0
    %281 = vmatprep.mubr.bf16.mxu0 0
    %282 = vmatmul.mubr.bf16.gmra.mxu0 %v136
    %v283 = vpop.f32.mrf.mxu0
    %v284 = vadd.f32 %v96, %v283
    %v285 = vpop.f32.mrf.mxu0
    %v286 = vpop.f32.mrf.mxu0
    %v287 = vadd.f32 %v96, %v286
    %v288 = vpop.f32.mrf.mxu0
    %289 = vdwg.mxu0
    %v290 = vtanh.pop %v228
    %v291 = vtanh.pop %v231
    %v292 = vtanh.pop %v236
    %v293 = vtanh.pop %v239
    %v294 = vtanh.pop %v244
    %v295 = vtanh.pop %v247
    %v296 = vtanh.pop %v252
    %v297 = vtanh.pop %v255
    %v298 = vtanh.pop %v260
    %v299 = vtanh.pop %v263
    %v300 = vtanh.pop %v268
    %v301 = vtanh.pop %v271
    %v302 = vtanh.pop %v276
    %v303 = vtanh.pop %v279
    %v304 = vtanh.pop %v284
    %v305 = vtanh.pop %v287
    %v306 = vld [vmem:[#allocation7] sm:$0xff]
    %v307 = vld [vmem:[#allocation7 + $0x8] sm:$0xff]
    %v308 = vld [vmem:[#allocation7 + $0x10] sm:$0xff]
    %v309 = vld [vmem:[#allocation7 + $0x18] sm:$0xff]
    %v310 = vld [vmem:[#allocation7 + $0x20] sm:$0xff]
    %v311 = vld [vmem:[#allocation7 + $0x28] sm:$0xff]
    %v312 = vld [vmem:[#allocation7 + $0x30] sm:$0xff]
    %v313 = vld [vmem:[#allocation7 + $0x38] sm:$0xff]
    %v314 = vld [vmem:[#allocation7 + $0x40] sm:$0xff]
    %v315 = vld [vmem:[#allocation7 + $0x48] sm:$0xff]
    %v316 = vld [vmem:[#allocation7 + $0x50] sm:$0xff]
    %v317 = vld [vmem:[#allocation7 + $0x58] sm:$0xff]
    %v318 = vld [vmem:[#allocation7 + $0x60] sm:$0xff]
    %v319 = vld [vmem:[#allocation7 + $0x68] sm:$0xff]
    %v320 = vld [vmem:[#allocation7 + $0x70] sm:$0xff]
    %v321 = vld [vmem:[#allocation7 + $0x78] sm:$0xff]
    %322 = vmatprep.subr.mxu0 0.0
    %323 = vmatpush1.msra.mxu0 %v321
    %324 = vmatprep.subr.mxu0 0.0
    %325 = vmatpush1.msra.mxu0 %v320
    %326 = vmatprep.subr.mxu0 0.0
    %327 = vmatpush1.msra.mxu0 %v319
    %328 = vmatprep.subr.mxu0 0.0
    %329 = vmatpush1.msra.mxu0 %v318
    %330 = vmatprep.subr.mxu0 0.0
    %331 = vmatpush1.msra.mxu0 %v317
    %332 = vmatprep.subr.mxu0 0.0
    %333 = vmatpush1.msra.mxu0 %v316
    %334 = vmatprep.subr.mxu0 0.0
    %335 = vmatpush1.msra.mxu0 %v315
    %336 = vmatprep.subr.mxu0 0.0
    %337 = vmatpush1.msra.mxu0 %v314
    %338 = vmatprep.subr.mxu0 0.0
    %339 = vmatpush1.msra.mxu0 %v313
    %340 = vmatprep.subr.mxu0 0.0
    %341 = vmatpush1.msra.mxu0 %v312
    %342 = vmatprep.subr.mxu0 0.0
    %343 = vmatpush1.msra.mxu0 %v311
    %344 = vmatprep.subr.mxu0 0.0
    %345 = vmatpush1.msra.mxu0 %v310
    %346 = vmatprep.subr.mxu0 0.0
    %347 = vmatpush1.msra.mxu0 %v309
    %348 = vmatprep.subr.mxu0 0.0
    %349 = vmatpush1.msra.mxu0 %v308
    %350 = vmatprep.subr.mxu0 0.0
    %351 = vmatpush1.msra.mxu0 %v307
    %352 = vmatprep.subr.mxu0 0.0
    %353 = vmatpush1.msra.mxu0 %v306
    %354 = vmatprep.subr.mxu0 0.0
    %355 = vmatpush2.msra.mxu0 0.0
    %356 = vmatprep.subr.mxu0 0.0
    %357 = vmatpush2.msra.mxu0 0.0
    %358 = vmatprep.subr.mxu0 0.0
    %359 = vmatpush2.msra.mxu0 0.0
    %360 = vmatprep.subr.mxu0 0.0
    %361 = vmatpush2.msra.mxu0 0.0
    %362 = vmatprep.subr.mxu0 0.0
    %363 = vmatpush2.msra.mxu0 0.0
    %364 = vmatprep.subr.mxu0 0.0
    %365 = vmatpush2.msra.mxu0 0.0
    %366 = vmatprep.subr.mxu0 0.0
    %367 = vmatpush2.msra.mxu0 0.0
    %368 = vmatprep.subr.mxu0 0.0
    %369 = vmatpush2.msra.mxu0 0.0
    %370 = vmatprep.subr.mxu0 0.0
    %371 = vmatpush2.msra.mxu0 0.0
    %372 = vmatprep.subr.mxu0 0.0
    %373 = vmatpush2.msra.mxu0 0.0
    %374 = vmatprep.subr.mxu0 0.0
    %375 = vmatpush2.msra.mxu0 0.0
    %376 = vmatprep.subr.mxu0 0.0
    %377 = vmatpush2.msra.mxu0 0.0
    %378 = vmatprep.subr.mxu0 0.0
    %379 = vmatpush2.msra.mxu0 0.0
    %380 = vmatprep.subr.mxu0 0.0
    %381 = vmatpush2.msra.mxu0 0.0
    %382 = vmatprep.subr.mxu0 0.0
    %383 = vmatpush2.msra.mxu0 0.0
    %384 = vmatprep.subr.mxu0 0.0
    %385 = vmatpush2.msra.mxu0 0.0
    %386 = vmatprep.mubr.f32.mxu0 0.0
    %387 = vmatmul.mubr.f32.gmra.mxu0 %v290
    %v388 = vpop.f32.mrf.mxu0
    %v389 = vadd.f32 0.0, %v388
    %v390 = vpop.f32.mrf.mxu0
    %391 = vmatprep.mubr.f32.mxu0 0.0
    %392 = vmatmul.mubr.f32.gmra.mxu0 %v291
    %v393 = vpop.f32.mrf.mxu0
    %v394 = vadd.f32 0.0, %v393
    %v395 = vpop.f32.mrf.mxu0
    %396 = vmatprep.mubr.f32.mxu0 0.0
    %397 = vmatmul.mubr.f32.gmra.mxu0 %v292
    %v398 = vpop.f32.mrf.mxu0
    %v399 = vadd.f32 0.0, %v398
    %v400 = vpop.f32.mrf.mxu0
    %401 = vmatprep.mubr.f32.mxu0 0.0
    %402 = vmatmul.mubr.f32.gmra.mxu0 %v293
    %v403 = vpop.f32.mrf.mxu0
    %v404 = vadd.f32 0.0, %v403
    %v405 = vpop.f32.mrf.mxu0
    %406 = vmatprep.mubr.f32.mxu0 0.0
    %407 = vmatmul.mubr.f32.gmra.mxu0 %v294
    %v408 = vpop.f32.mrf.mxu0
    %v409 = vadd.f32 0.0, %v408
    %v410 = vpop.f32.mrf.mxu0
    %411 = vmatprep.mubr.f32.mxu0 0.0
    %412 = vmatmul.mubr.f32.gmra.mxu0 %v295
    %v413 = vpop.f32.mrf.mxu0
    %v414 = vadd.f32 0.0, %v413
    %v415 = vpop.f32.mrf.mxu0
    %416 = vmatprep.mubr.f32.mxu0 0.0
    %417 = vmatmul.mubr.f32.gmra.mxu0 %v296
    %v418 = vpop.f32.mrf.mxu0
    %v419 = vadd.f32 0.0, %v418
    %v420 = vpop.f32.mrf.mxu0
    %421 = vmatprep.mubr.f32.mxu0 0.0
    %422 = vmatmul.mubr.f32.gmra.mxu0 %v297
    %v423 = vpop.f32.mrf.mxu0
    %v424 = vadd.f32 0.0, %v423
    %v425 = vpop.f32.mrf.mxu0
    %426 = vmatprep.mubr.f32.mxu0 0.0
    %427 = vmatmul.mubr.f32.gmra.mxu0 %v298
    %v428 = vpop.f32.mrf.mxu0
    %v429 = vadd.f32 0.0, %v428
    %v430 = vpop.f32.mrf.mxu0
    %431 = vmatprep.mubr.f32.mxu0 0.0
    %432 = vmatmul.mubr.f32.gmra.mxu0 %v299
    %v433 = vpop.f32.mrf.mxu0
    %v434 = vadd.f32 0.0, %v433
    %v435 = vpop.f32.mrf.mxu0
    %436 = vmatprep.mubr.f32.mxu0 0.0
    %437 = vmatmul.mubr.f32.gmra.mxu0 %v300
    %v438 = vpop.f32.mrf.mxu0
    %v439 = vadd.f32 0.0, %v438
    %v440 = vpop.f32.mrf.mxu0
    %441 = vmatprep.mubr.f32.mxu0 0.0
    %442 = vmatmul.mubr.f32.gmra.mxu0 %v301
    %v443 = vpop.f32.mrf.mxu0
    %v444 = vadd.f32 0.0, %v443
    %v445 = vpop.f32.mrf.mxu0
    %446 = vmatprep.mubr.f32.mxu0 0.0
    %447 = vmatmul.mubr.f32.gmra.mxu0 %v302
    %v448 = vpop.f32.mrf.mxu0
    %v449 = vadd.f32 0.0, %v448
    %v450 = vpop.f32.mrf.mxu0
    %451 = vmatprep.mubr.f32.mxu0 0.0
    %452 = vmatmul.mubr.f32.gmra.mxu0 %v303
    %v453 = vpop.f32.mrf.mxu0
    %v454 = vadd.f32 0.0, %v453
    %v455 = vpop.f32.mrf.mxu0
    %456 = vmatprep.mubr.f32.mxu0 0.0
    %457 = vmatmul.mubr.f32.gmra.mxu0 %v304
    %v458 = vpop.f32.mrf.mxu0
    %v459 = vadd.f32 0.0, %v458
    %v460 = vpop.f32.mrf.mxu0
    %461 = vmatprep.mubr.f32.mxu0 0.0
    %462 = vmatmul.mubr.f32.gmra.mxu0 %v305
    %v463 = vpop.f32.mrf.mxu0
    %v464 = vadd.f32 0.0, %v463
    %v465 = vpop.f32.mrf.mxu0
    %466 = vdwg.mxu0
    %v467 = vpack.c.bf16 %v394, %v389
    %v468 = vpack.c.bf16 %v404, %v399
    %v469 = vpack.c.bf16 %v414, %v409
    %v470 = vpack.c.bf16 %v424, %v419
    %v471 = vpack.c.bf16 %v434, %v429
    %v472 = vpack.c.bf16 %v444, %v439
    %v473 = vpack.c.bf16 %v454, %v449
    %v474 = vpack.c.bf16 %v464, %v459
    %v475 = vld [vmem:[#allocation7 + $0x188] sm:$0x1]
    %v476 = vlaneseq
    %v477 = vshrl.u32 %v476, 7
    %v478 = vsub.s32 0, %v477
    %v479 = vrot.slane %v475, %v478
    %480 = vmatprep.subr.bf16.mxu0 0
    %481 = vmatpush1.bf16.msra.mxu0 %v474
    %482 = vmatprep.subr.bf16.mxu0 0
    %483 = vmatpush1.bf16.msra.mxu0 %v473
    %484 = vmatprep.subr.bf16.mxu0 0
    %485 = vmatpush1.bf16.msra.mxu0 %v472
    %486 = vmatprep.subr.bf16.mxu0 0
    %487 = vmatpush1.bf16.msra.mxu0 %v471
    %488 = vmatprep.subr.bf16.mxu0 0
    %489 = vmatpush1.bf16.msra.mxu0 %v470
    %490 = vmatprep.subr.bf16.mxu0 0
    %491 = vmatpush1.bf16.msra.mxu0 %v469
    %492 = vmatprep.subr.bf16.mxu0 0
    %493 = vmatpush1.bf16.msra.mxu0 %v468
    %494 = vmatprep.subr.bf16.mxu0 0
    %495 = vmatpush1.bf16.msra.mxu0 %v467
    %496 = vmatprep.subr.bf16.mxu0 0
    %497 = vmatpush2.bf16.msra.mxu0 0
    %498 = vmatprep.subr.bf16.mxu0 0
    %499 = vmatpush2.bf16.msra.mxu0 0
    %500 = vmatprep.subr.bf16.mxu0 0
    %501 = vmatpush2.bf16.msra.mxu0 0
    %502 = vmatprep.subr.bf16.mxu0 0
    %503 = vmatpush2.bf16.msra.mxu0 0
    %504 = vmatprep.subr.bf16.mxu0 0
    %505 = vmatpush2.bf16.msra.mxu0 0
    %506 = vmatprep.subr.bf16.mxu0 0
    %507 = vmatpush2.bf16.msra.mxu0 0
    %508 = vmatprep.subr.bf16.mxu0 0
    %509 = vmatpush2.bf16.msra.mxu0 0
    %510 = vmatprep.subr.bf16.mxu0 0
    %511 = vmatpush2.bf16.msra.mxu0 0
    %512 = vmatprep.mubr.bf16.mxu0 0
    %513 = vmatmul.mubr.bf16.gmra.mxu0 %v129
    %v514 = vpop.f32.mrf.mxu0
    %v515 = vadd.f32 %v479, %v514
    %v516 = vpop.f32.mrf.mxu0
    %v517 = vpop.f32.mrf.mxu0
    %v518 = vadd.f32 %v479, %v517
    %v519 = vpop.f32.mrf.mxu0
    %520 = vmatprep.mubr.bf16.mxu0 0
    %521 = vmatmul.mubr.bf16.gmra.mxu0 %v130
    %v522 = vpop.f32.mrf.mxu0
    %v523 = vadd.f32 %v479, %v522
    %v524 = vpop.f32.mrf.mxu0
    %v525 = vpop.f32.mrf.mxu0
    %v526 = vadd.f32 %v479, %v525
    %v527 = vpop.f32.mrf.mxu0
    %528 = vmatprep.mubr.bf16.mxu0 0
    %529 = vmatmul.mubr.bf16.gmra.mxu0 %v131
    %v530 = vpop.f32.mrf.mxu0
    %v531 = vadd.f32 %v479, %v530
    %v532 = vpop.f32.mrf.mxu0
    %v533 = vpop.f32.mrf.mxu0
    %v534 = vadd.f32 %v479, %v533
    %v535 = vpop.f32.mrf.mxu0
    %536 = vmatprep.mubr.bf16.mxu0 0
    %537 = vmatmul.mubr.bf16.gmra.mxu0 %v132
    %v538 = vpop.f32.mrf.mxu0
    %v539 = vadd.f32 %v479, %v538
    %v540 = vpop.f32.mrf.mxu0
    %v541 = vpop.f32.mrf.mxu0
    %v542 = vadd.f32 %v479, %v541
    %v543 = vpop.f32.mrf.mxu0
    %544 = vmatprep.mubr.bf16.mxu0 0
    %545 = vmatmul.mubr.bf16.gmra.mxu0 %v133
    %v546 = vpop.f32.mrf.mxu0
    %v547 = vadd.f32 %v479, %v546
    %v548 = vpop.f32.mrf.mxu0
    %v549 = vpop.f32.mrf.mxu0
    %v550 = vadd.f32 %v479, %v549
    %v551 = vpop.f32.mrf.mxu0
    %552 = vmatprep.mubr.bf16.mxu0 0
    %553 = vmatmul.mubr.bf16.gmra.mxu0 %v134
    %v554 = vpop.f32.mrf.mxu0
    %v555 = vadd.f32 %v479, %v554
    %v556 = vpop.f32.mrf.mxu0
    %v557 = vpop.f32.mrf.mxu0
    %v558 = vadd.f32 %v479, %v557
    %v559 = vpop.f32.mrf.mxu0
    %560 = vmatprep.mubr.bf16.mxu0 0
    %561 = vmatmul.mubr.bf16.gmra.mxu0 %v135
    %v562 = vpop.f32.mrf.mxu0
    %v563 = vadd.f32 %v479, %v562
    %v564 = vpop.f32.mrf.mxu0
    %v565 = vpop.f32.mrf.mxu0
    %v566 = vadd.f32 %v479, %v565
    %v567 = vpop.f32.mrf.mxu0
    %568 = vmatprep.mubr.bf16.mxu0 0
    %569 = vmatmul.mubr.bf16.gmra.mxu0 %v136
    %v570 = vpop.f32.mrf.mxu0
    %v571 = vadd.f32 %v479, %v570
    %v572 = vpop.f32.mrf.mxu0
    %v573 = vpop.f32.mrf.mxu0
    %v574 = vadd.f32 %v479, %v573
    %v575 = vpop.f32.mrf.mxu0
    %576 = vdwg.mxu0
    %v577 = vtanh.pop %v515
    %v578 = vtanh.pop %v518
    %v579 = vtanh.pop %v523
    %v580 = vtanh.pop %v526
    %v581 = vtanh.pop %v531
    %v582 = vtanh.pop %v534
    %v583 = vtanh.pop %v539
    %v584 = vtanh.pop %v542
    %v585 = vtanh.pop %v547
    %v586 = vtanh.pop %v550
    %v587 = vtanh.pop %v555
    %v588 = vtanh.pop %v558
    %v589 = vtanh.pop %v563
    %v590 = vtanh.pop %v566
    %v591 = vtanh.pop %v571
    %v592 = vtanh.pop %v574
    %v593 = vld [vmem:[#allocation7 + $0x80] sm:$0xff]
    %v594 = vld [vmem:[#allocation7 + $0x88] sm:$0xff]
    %v595 = vld [vmem:[#allocation7 + $0x90] sm:$0xff]
    %v596 = vld [vmem:[#allocation7 + $0x98] sm:$0xff]
    %v597 = vld [vmem:[#allocation7 + $0xa0] sm:$0xff]
    %v598 = vld [vmem:[#allocation7 + $0xa8] sm:$0xff]
    %v599 = vld [vmem:[#allocation7 + $0xb0] sm:$0xff]
    %v600 = vld [vmem:[#allocation7 + $0xb8] sm:$0xff]
    %v601 = vld [vmem:[#allocation7 + $0xc0] sm:$0xff]
    %v602 = vld [vmem:[#allocation7 + $0xc8] sm:$0xff]
    %v603 = vld [vmem:[#allocation7 + $0xd0] sm:$0xff]
    %v604 = vld [vmem:[#allocation7 + $0xd8] sm:$0xff]
    %v605 = vld [vmem:[#allocation7 + $0xe0] sm:$0xff]
    %v606 = vld [vmem:[#allocation7 + $0xe8] sm:$0xff]
    %v607 = vld [vmem:[#allocation7 + $0xf0] sm:$0xff]
    %v608 = vld [vmem:[#allocation7 + $0xf8] sm:$0xff]
    %609 = vmatprep.subr.mxu0 0.0
    %610 = vmatpush1.msra.mxu0 %v608
    %611 = vmatprep.subr.mxu0 0.0
    %612 = vmatpush1.msra.mxu0 %v607
    %613 = vmatprep.subr.mxu0 0.0
    %614 = vmatpush1.msra.mxu0 %v606
    %615 = vmatprep.subr.mxu0 0.0
    %616 = vmatpush1.msra.mxu0 %v605
    %617 = vmatprep.subr.mxu0 0.0
    %618 = vmatpush1.msra.mxu0 %v604
    %619 = vmatprep.subr.mxu0 0.0
    %620 = vmatpush1.msra.mxu0 %v603
    %621 = vmatprep.subr.mxu0 0.0
    %622 = vmatpush1.msra.mxu0 %v602
    %623 = vmatprep.subr.mxu0 0.0
    %624 = vmatpush1.msra.mxu0 %v601
    %625 = vmatprep.subr.mxu0 0.0
    %626 = vmatpush1.msra.mxu0 %v600
    %627 = vmatprep.subr.mxu0 0.0
    %628 = vmatpush1.msra.mxu0 %v599
    %629 = vmatprep.subr.mxu0 0.0
    %630 = vmatpush1.msra.mxu0 %v598
    %631 = vmatprep.subr.mxu0 0.0
    %632 = vmatpush1.msra.mxu0 %v597
    %633 = vmatprep.subr.mxu0 0.0
    %634 = vmatpush1.msra.mxu0 %v596
    %635 = vmatprep.subr.mxu0 0.0
    %636 = vmatpush1.msra.mxu0 %v595
    %637 = vmatprep.subr.mxu0 0.0
    %638 = vmatpush1.msra.mxu0 %v594
    %639 = vmatprep.subr.mxu0 0.0
    %640 = vmatpush1.msra.mxu0 %v593
    %641 = vmatprep.subr.mxu0 0.0
    %642 = vmatpush2.msra.mxu0 0.0
    %643 = vmatprep.subr.mxu0 0.0
    %644 = vmatpush2.msra.mxu0 0.0
    %645 = vmatprep.subr.mxu0 0.0
    %646 = vmatpush2.msra.mxu0 0.0
    %647 = vmatprep.subr.mxu0 0.0
    %648 = vmatpush2.msra.mxu0 0.0
    %649 = vmatprep.subr.mxu0 0.0
    %650 = vmatpush2.msra.mxu0 0.0
    %651 = vmatprep.subr.mxu0 0.0
    %652 = vmatpush2.msra.mxu0 0.0
    %653 = vmatprep.subr.mxu0 0.0
    %654 = vmatpush2.msra.mxu0 0.0
    %655 = vmatprep.subr.mxu0 0.0
    %656 = vmatpush2.msra.mxu0 0.0
    %657 = vmatprep.subr.mxu0 0.0
    %658 = vmatpush2.msra.mxu0 0.0
    %659 = vmatprep.subr.mxu0 0.0
    %660 = vmatpush2.msra.mxu0 0.0
    %661 = vmatprep.subr.mxu0 0.0
    %662 = vmatpush2.msra.mxu0 0.0
    %663 = vmatprep.subr.mxu0 0.0
    %664 = vmatpush2.msra.mxu0 0.0
    %665 = vmatprep.subr.mxu0 0.0
    %666 = vmatpush2.msra.mxu0 0.0
    %667 = vmatprep.subr.mxu0 0.0
    %668 = vmatpush2.msra.mxu0 0.0
    %669 = vmatprep.subr.mxu0 0.0
    %670 = vmatpush2.msra.mxu0 0.0
    %671 = vmatprep.subr.mxu0 0.0
    %672 = vmatpush2.msra.mxu0 0.0
    %673 = vmatprep.mubr.f32.mxu0 0.0
    %674 = vmatmul.mubr.f32.gmra.mxu0 %v577
    %v675 = vpop.f32.mrf.mxu0
    %v676 = vadd.f32 0.0, %v675
    %v677 = vpop.f32.mrf.mxu0
    %678 = vmatprep.mubr.f32.mxu0 0.0
    %679 = vmatmul.mubr.f32.gmra.mxu0 %v578
    %v680 = vpop.f32.mrf.mxu0
    %v681 = vadd.f32 0.0, %v680
    %v682 = vpop.f32.mrf.mxu0
    %683 = vmatprep.mubr.f32.mxu0 0.0
    %684 = vmatmul.mubr.f32.gmra.mxu0 %v579
    %v685 = vpop.f32.mrf.mxu0
    %v686 = vadd.f32 0.0, %v685
    %v687 = vpop.f32.mrf.mxu0
    %688 = vmatprep.mubr.f32.mxu0 0.0
    %689 = vmatmul.mubr.f32.gmra.mxu0 %v580
    %v690 = vpop.f32.mrf.mxu0
    %v691 = vadd.f32 0.0, %v690
    %v692 = vpop.f32.mrf.mxu0
    %693 = vmatprep.mubr.f32.mxu0 0.0
    %694 = vmatmul.mubr.f32.gmra.mxu0 %v581
    %v695 = vpop.f32.mrf.mxu0
    %v696 = vadd.f32 0.0, %v695
    %v697 = vpop.f32.mrf.mxu0
    %698 = vmatprep.mubr.f32.mxu0 0.0
    %699 = vmatmul.mubr.f32.gmra.mxu0 %v582
    %v700 = vpop.f32.mrf.mxu0
    %v701 = vadd.f32 0.0, %v700
    %v702 = vpop.f32.mrf.mxu0
    %703 = vmatprep.mubr.f32.mxu0 0.0
    %704 = vmatmul.mubr.f32.gmra.mxu0 %v583
    %v705 = vpop.f32.mrf.mxu0
    %v706 = vadd.f32 0.0, %v705
    %v707 = vpop.f32.mrf.mxu0
    %708 = vmatprep.mubr.f32.mxu0 0.0
    %709 = vmatmul.mubr.f32.gmra.mxu0 %v584
    %v710 = vpop.f32.mrf.mxu0
    %v711 = vadd.f32 0.0, %v710
    %v712 = vpop.f32.mrf.mxu0
    %713 = vmatprep.mubr.f32.mxu0 0.0
    %714 = vmatmul.mubr.f32.gmra.mxu0 %v585
    %v715 = vpop.f32.mrf.mxu0
    %v716 = vadd.f32 0.0, %v715
    %v717 = vpop.f32.mrf.mxu0
    %718 = vmatprep.mubr.f32.mxu0 0.0
    %719 = vmatmul.mubr.f32.gmra.mxu0 %v586
    %v720 = vpop.f32.mrf.mxu0
    %v721 = vadd.f32 0.0, %v720
    %v722 = vpop.f32.mrf.mxu0
    %723 = vmatprep.mubr.f32.mxu0 0.0
    %724 = vmatmul.mubr.f32.gmra.mxu0 %v587
    %v725 = vpop.f32.mrf.mxu0
    %v726 = vadd.f32 0.0, %v725
    %v727 = vpop.f32.mrf.mxu0
    %728 = vmatprep.mubr.f32.mxu0 0.0
    %729 = vmatmul.mubr.f32.gmra.mxu0 %v588
    %v730 = vpop.f32.mrf.mxu0
    %v731 = vadd.f32 0.0, %v730
    %v732 = vpop.f32.mrf.mxu0
    %733 = vmatprep.mubr.f32.mxu0 0.0
    %734 = vmatmul.mubr.f32.gmra.mxu0 %v589
    %v735 = vpop.f32.mrf.mxu0
    %v736 = vadd.f32 0.0, %v735
    %v737 = vpop.f32.mrf.mxu0
    %738 = vmatprep.mubr.f32.mxu0 0.0
    %739 = vmatmul.mubr.f32.gmra.mxu0 %v590
    %v740 = vpop.f32.mrf.mxu0
    %v741 = vadd.f32 0.0, %v740
    %v742 = vpop.f32.mrf.mxu0
    %743 = vmatprep.mubr.f32.mxu0 0.0
    %744 = vmatmul.mubr.f32.gmra.mxu0 %v591
    %v745 = vpop.f32.mrf.mxu0
    %v746 = vadd.f32 0.0, %v745
    %v747 = vpop.f32.mrf.mxu0
    %748 = vmatprep.mubr.f32.mxu0 0.0
    %749 = vmatmul.mubr.f32.gmra.mxu0 %v592
    %v750 = vpop.f32.mrf.mxu0
    %v751 = vadd.f32 0.0, %v750
    %v752 = vpop.f32.mrf.mxu0
    %753 = vdwg.mxu0
    %v754 = vpack.c.bf16 %v681, %v676
    %v755 = vpack.c.bf16 %v691, %v686
    %v756 = vpack.c.bf16 %v701, %v696
    %v757 = vpack.c.bf16 %v711, %v706
    %v758 = vpack.c.bf16 %v721, %v716
    %v759 = vpack.c.bf16 %v731, %v726
    %v760 = vpack.c.bf16 %v741, %v736
    %v761 = vpack.c.bf16 %v751, %v746
    %v762 = vld [vmem:[#allocation7 + $0x190] sm:$0x1]
    %v763 = vlaneseq
    %v764 = vshrl.u32 %v763, 7
    %v765 = vsub.s32 0, %v764
    %v766 = vrot.slane %v762, %v765
    %767 = vmatprep.subr.bf16.mxu0 0
    %768 = vmatpush1.bf16.msra.mxu0 %v761
    %769 = vmatprep.subr.bf16.mxu0 0
    %770 = vmatpush1.bf16.msra.mxu0 %v760
    %771 = vmatprep.subr.bf16.mxu0 0
    %772 = vmatpush1.bf16.msra.mxu0 %v759
    %773 = vmatprep.subr.bf16.mxu0 0
    %774 = vmatpush1.bf16.msra.mxu0 %v758
    %775 = vmatprep.subr.bf16.mxu0 0
    %776 = vmatpush1.bf16.msra.mxu0 %v757
    %777 = vmatprep.subr.bf16.mxu0 0
    %778 = vmatpush1.bf16.msra.mxu0 %v756
    %779 = vmatprep.subr.bf16.mxu0 0
    %780 = vmatpush1.bf16.msra.mxu0 %v755
    %781 = vmatprep.subr.bf16.mxu0 0
    %782 = vmatpush1.bf16.msra.mxu0 %v754
    %783 = vmatprep.subr.bf16.mxu0 0
    %784 = vmatpush2.bf16.msra.mxu0 0
    %785 = vmatprep.subr.bf16.mxu0 0
    %786 = vmatpush2.bf16.msra.mxu0 0
    %787 = vmatprep.subr.bf16.mxu0 0
    %788 = vmatpush2.bf16.msra.mxu0 0
    %789 = vmatprep.subr.bf16.mxu0 0
    %790 = vmatpush2.bf16.msra.mxu0 0
    %791 = vmatprep.subr.bf16.mxu0 0
    %792 = vmatpush2.bf16.msra.mxu0 0
    %793 = vmatprep.subr.bf16.mxu0 0
    %794 = vmatpush2.bf16.msra.mxu0 0
    %795 = vmatprep.subr.bf16.mxu0 0
    %796 = vmatpush2.bf16.msra.mxu0 0
    %797 = vmatprep.subr.bf16.mxu0 0
    %798 = vmatpush2.bf16.msra.mxu0 0
    %799 = vmatprep.mubr.bf16.mxu0 0
    %800 = vmatmul.mubr.bf16.gmra.mxu0 %v129
    %v801 = vpop.f32.mrf.mxu0
    %v802 = vadd.f32 %v766, %v801
    %v803 = vpop.f32.mrf.mxu0
    %v804 = vpop.f32.mrf.mxu0
    %v805 = vadd.f32 %v766, %v804
    %v806 = vpop.f32.mrf.mxu0
    %807 = vmatprep.mubr.bf16.mxu0 0
    %808 = vmatmul.mubr.bf16.gmra.mxu0 %v130
    %v809 = vpop.f32.mrf.mxu0
    %v810 = vadd.f32 %v766, %v809
    %v811 = vpop.f32.mrf.mxu0
    %v812 = vpop.f32.mrf.mxu0
    %v813 = vadd.f32 %v766, %v812
    %v814 = vpop.f32.mrf.mxu0
    %815 = vmatprep.mubr.bf16.mxu0 0
    %816 = vmatmul.mubr.bf16.gmra.mxu0 %v131
    %v817 = vpop.f32.mrf.mxu0
    %v818 = vadd.f32 %v766, %v817
    %v819 = vpop.f32.mrf.mxu0
    %v820 = vpop.f32.mrf.mxu0
    %v821 = vadd.f32 %v766, %v820
    %v822 = vpop.f32.mrf.mxu0
    %823 = vmatprep.mubr.bf16.mxu0 0
    %824 = vmatmul.mubr.bf16.gmra.mxu0 %v132
    %v825 = vpop.f32.mrf.mxu0
    %v826 = vadd.f32 %v766, %v825
    %v827 = vpop.f32.mrf.mxu0
    %v828 = vpop.f32.mrf.mxu0
    %v829 = vadd.f32 %v766, %v828
    %v830 = vpop.f32.mrf.mxu0
    %831 = vmatprep.mubr.bf16.mxu0 0
    %832 = vmatmul.mubr.bf16.gmra.mxu0 %v133
    %v833 = vpop.f32.mrf.mxu0
    %v834 = vadd.f32 %v766, %v833
    %v835 = vpop.f32.mrf.mxu0
    %v836 = vpop.f32.mrf.mxu0
    %v837 = vadd.f32 %v766, %v836
    %v838 = vpop.f32.mrf.mxu0
    %839 = vmatprep.mubr.bf16.mxu0 0
    %840 = vmatmul.mubr.bf16.gmra.mxu0 %v134
    %v841 = vpop.f32.mrf.mxu0
    %v842 = vadd.f32 %v766, %v841
    %v843 = vpop.f32.mrf.mxu0
    %v844 = vpop.f32.mrf.mxu0
    %v845 = vadd.f32 %v766, %v844
    %v846 = vpop.f32.mrf.mxu0
    %847 = vmatprep.mubr.bf16.mxu0 0
    %848 = vmatmul.mubr.bf16.gmra.mxu0 %v135
    %v849 = vpop.f32.mrf.mxu0
    %v850 = vadd.f32 %v766, %v849
    %v851 = vpop.f32.mrf.mxu0
    %v852 = vpop.f32.mrf.mxu0
    %v853 = vadd.f32 %v766, %v852
    %v854 = vpop.f32.mrf.mxu0
    %855 = vmatprep.mubr.bf16.mxu0 0
    %856 = vmatmul.mubr.bf16.gmra.mxu0 %v136
    %v857 = vpop.f32.mrf.mxu0
    %v858 = vadd.f32 %v766, %v857
    %v859 = vpop.f32.mrf.mxu0
    %v860 = vpop.f32.mrf.mxu0
    %v861 = vadd.f32 %v766, %v860
    %v862 = vpop.f32.mrf.mxu0
    %863 = vdwg.mxu0
    %v864 = vtanh.pop %v802
    %v865 = vtanh.pop %v805
    %v866 = vtanh.pop %v810
    %v867 = vtanh.pop %v813
    %v868 = vtanh.pop %v818
    %v869 = vtanh.pop %v821
    %v870 = vtanh.pop %v826
    %v871 = vtanh.pop %v829
    %v872 = vtanh.pop %v834
    %v873 = vtanh.pop %v837
    %v874 = vtanh.pop %v842
    %v875 = vtanh.pop %v845
    %v876 = vtanh.pop %v850
    %v877 = vtanh.pop %v853
    %v878 = vtanh.pop %v858
    %v879 = vtanh.pop %v861
    %v880 = vld [vmem:[#allocation7 + $0x100] sm:$0xff]
    %v881 = vld [vmem:[#allocation7 + $0x108] sm:$0xff]
    %v882 = vld [vmem:[#allocation7 + $0x110] sm:$0xff]
    %v883 = vld [vmem:[#allocation7 + $0x118] sm:$0xff]
    %v884 = vld [vmem:[#allocation7 + $0x120] sm:$0xff]
    %v885 = vld [vmem:[#allocation7 + $0x128] sm:$0xff]
    %v886 = vld [vmem:[#allocation7 + $0x130] sm:$0xff]
    %v887 = vld [vmem:[#allocation7 + $0x138] sm:$0xff]
    %v888 = vld [vmem:[#allocation7 + $0x140] sm:$0xff]
    %v889 = vld [vmem:[#allocation7 + $0x148] sm:$0xff]
    %v890 = vld [vmem:[#allocation7 + $0x150] sm:$0xff]
    %v891 = vld [vmem:[#allocation7 + $0x158] sm:$0xff]
    %v892 = vld [vmem:[#allocation7 + $0x160] sm:$0xff]
    %v893 = vld [vmem:[#allocation7 + $0x168] sm:$0xff]
    %v894 = vld [vmem:[#allocation7 + $0x170] sm:$0xff]
    %v895 = vld [vmem:[#allocation7 + $0x178] sm:$0xff]
    %v896 = vld [vmem:[#allocation7 + $0x198] sm:$0x1]
    %v897 = vlaneseq
    %v898 = vshrl.u32 %v897, 7
    %v899 = vsub.s32 0, %v898
    %v900 = vrot.slane %v896, %v899
    %901 = vmatprep.subr.mxu0 0.0
    %902 = vmatpush1.msra.mxu0 %v895
    %903 = vmatprep.subr.mxu0 0.0
    %904 = vmatpush1.msra.mxu0 %v894
    %905 = vmatprep.subr.mxu0 0.0
    %906 = vmatpush1.msra.mxu0 %v893
    %907 = vmatprep.subr.mxu0 0.0
    %908 = vmatpush1.msra.mxu0 %v892
    %909 = vmatprep.subr.mxu0 0.0
    %910 = vmatpush1.msra.mxu0 %v891
    %911 = vmatprep.subr.mxu0 0.0
    %912 = vmatpush1.msra.mxu0 %v890
    %913 = vmatprep.subr.mxu0 0.0
    %914 = vmatpush1.msra.mxu0 %v889
    %915 = vmatprep.subr.mxu0 0.0
    %916 = vmatpush1.msra.mxu0 %v888
    %917 = vmatprep.subr.mxu0 0.0
    %918 = vmatpush1.msra.mxu0 %v887
    %919 = vmatprep.subr.mxu0 0.0
    %920 = vmatpush1.msra.mxu0 %v886
    %921 = vmatprep.subr.mxu0 0.0
    %922 = vmatpush1.msra.mxu0 %v885
    %923 = vmatprep.subr.mxu0 0.0
    %924 = vmatpush1.msra.mxu0 %v884
    %925 = vmatprep.subr.mxu0 0.0
    %926 = vmatpush1.msra.mxu0 %v883
    %927 = vmatprep.subr.mxu0 0.0
    %928 = vmatpush1.msra.mxu0 %v882
    %929 = vmatprep.subr.mxu0 0.0
    %930 = vmatpush1.msra.mxu0 %v881
    %931 = vmatprep.subr.mxu0 0.0
    %932 = vmatpush1.msra.mxu0 %v880
    %933 = vmatprep.subr.mxu0 0.0
    %934 = vmatpush2.msra.mxu0 0.0
    %935 = vmatprep.subr.mxu0 0.0
    %936 = vmatpush2.msra.mxu0 0.0
    %937 = vmatprep.subr.mxu0 0.0
    %938 = vmatpush2.msra.mxu0 0.0
    %939 = vmatprep.subr.mxu0 0.0
    %940 = vmatpush2.msra.mxu0 0.0
    %941 = vmatprep.subr.mxu0 0.0
    %942 = vmatpush2.msra.mxu0 0.0
    %943 = vmatprep.subr.mxu0 0.0
    %944 = vmatpush2.msra.mxu0 0.0
    %945 = vmatprep.subr.mxu0 0.0
    %946 = vmatpush2.msra.mxu0 0.0
    %947 = vmatprep.subr.mxu0 0.0
    %948 = vmatpush2.msra.mxu0 0.0
    %949 = vmatprep.subr.mxu0 0.0
    %950 = vmatpush2.msra.mxu0 0.0
    %951 = vmatprep.subr.mxu0 0.0
    %952 = vmatpush2.msra.mxu0 0.0
    %953 = vmatprep.subr.mxu0 0.0
    %954 = vmatpush2.msra.mxu0 0.0
    %955 = vmatprep.subr.mxu0 0.0
    %956 = vmatpush2.msra.mxu0 0.0
    %957 = vmatprep.subr.mxu0 0.0
    %958 = vmatpush2.msra.mxu0 0.0
    %959 = vmatprep.subr.mxu0 0.0
    %960 = vmatpush2.msra.mxu0 0.0
    %961 = vmatprep.subr.mxu0 0.0
    %962 = vmatpush2.msra.mxu0 0.0
    %963 = vmatprep.subr.mxu0 0.0
    %964 = vmatpush2.msra.mxu0 0.0
    %965 = vmatprep.mubr.f32.mxu0 0.0
    %966 = vmatmul.mubr.f32.gmra.mxu0 %v864
    %v967 = vpop.f32.mrf.mxu0
    %v968 = vadd.f32 %v900, %v967
    %v969 = vpop.f32.mrf.mxu0
    %970 = vmatprep.mubr.f32.mxu0 0.0
    %971 = vmatmul.mubr.f32.gmra.mxu0 %v865
    %v972 = vpop.f32.mrf.mxu0
    %v973 = vadd.f32 %v900, %v972
    %v974 = vpop.f32.mrf.mxu0
    %975 = vmatprep.mubr.f32.mxu0 0.0
    %976 = vmatmul.mubr.f32.gmra.mxu0 %v866
    %v977 = vpop.f32.mrf.mxu0
    %v978 = vadd.f32 %v900, %v977
    %v979 = vpop.f32.mrf.mxu0
    %980 = vmatprep.mubr.f32.mxu0 0.0
    %981 = vmatmul.mubr.f32.gmra.mxu0 %v867
    %v982 = vpop.f32.mrf.mxu0
    %v983 = vadd.f32 %v900, %v982
    %v984 = vpop.f32.mrf.mxu0
    %985 = vmatprep.mubr.f32.mxu0 0.0
    %986 = vmatmul.mubr.f32.gmra.mxu0 %v868
    %v987 = vpop.f32.mrf.mxu0
    %v988 = vadd.f32 %v900, %v987
    %v989 = vpop.f32.mrf.mxu0
    %990 = vmatprep.mubr.f32.mxu0 0.0
    %991 = vmatmul.mubr.f32.gmra.mxu0 %v869
    %v992 = vpop.f32.mrf.mxu0
    %v993 = vadd.f32 %v900, %v992
    %v994 = vpop.f32.mrf.mxu0
    %995 = vmatprep.mubr.f32.mxu0 0.0
    %996 = vmatmul.mubr.f32.gmra.mxu0 %v870
    %v997 = vpop.f32.mrf.mxu0
    %v998 = vadd.f32 %v900, %v997
    %v999 = vpop.f32.mrf.mxu0
    %1000 = vmatprep.mubr.f32.mxu0 0.0
    %1001 = vmatmul.mubr.f32.gmra.mxu0 %v871
    %v1002 = vpop.f32.mrf.mxu0
    %v1003 = vadd.f32 %v900, %v1002
    %v1004 = vpop.f32.mrf.mxu0
    %1005 = vmatprep.mubr.f32.mxu0 0.0
    %1006 = vmatmul.mubr.f32.gmra.mxu0 %v872
    %v1007 = vpop.f32.mrf.mxu0
    %v1008 = vadd.f32 %v900, %v1007
    %v1009 = vpop.f32.mrf.mxu0
    %1010 = vmatprep.mubr.f32.mxu0 0.0
    %1011 = vmatmul.mubr.f32.gmra.mxu0 %v873
    %v1012 = vpop.f32.mrf.mxu0
    %v1013 = vadd.f32 %v900, %v1012
    %v1014 = vpop.f32.mrf.mxu0
    %1015 = vmatprep.mubr.f32.mxu0 0.0
    %1016 = vmatmul.mubr.f32.gmra.mxu0 %v874
    %v1017 = vpop.f32.mrf.mxu0
    %v1018 = vadd.f32 %v900, %v1017
    %v1019 = vpop.f32.mrf.mxu0
    %1020 = vmatprep.mubr.f32.mxu0 0.0
    %1021 = vmatmul.mubr.f32.gmra.mxu0 %v875
    %v1022 = vpop.f32.mrf.mxu0
    %v1023 = vadd.f32 %v900, %v1022
    %v1024 = vpop.f32.mrf.mxu0
    %1025 = vmatprep.mubr.f32.mxu0 0.0
    %1026 = vmatmul.mubr.f32.gmra.mxu0 %v876
    %v1027 = vpop.f32.mrf.mxu0
    %v1028 = vadd.f32 %v900, %v1027
    %v1029 = vpop.f32.mrf.mxu0
    %1030 = vmatprep.mubr.f32.mxu0 0.0
    %1031 = vmatmul.mubr.f32.gmra.mxu0 %v877
    %v1032 = vpop.f32.mrf.mxu0
    %v1033 = vadd.f32 %v900, %v1032
    %v1034 = vpop.f32.mrf.mxu0
    %1035 = vmatprep.mubr.f32.mxu0 0.0
    %1036 = vmatmul.mubr.f32.gmra.mxu0 %v878
    %v1037 = vpop.f32.mrf.mxu0
    %v1038 = vadd.f32 %v900, %v1037
    %v1039 = vpop.f32.mrf.mxu0
    %1040 = vmatprep.mubr.f32.mxu0 0.0
    %1041 = vmatmul.mubr.f32.gmra.mxu0 %v879
    %v1042 = vpop.f32.mrf.mxu0
    %v1043 = vadd.f32 %v900, %v1042
    %v1044 = vpop.f32.mrf.mxu0
    %1045 = vdwg.mxu0
    %v1046 = vpack.c.bf16 %v973, %v968
    %v1047 = vpack.c.bf16 %v983, %v978
    %v1048 = vpack.c.bf16 %v993, %v988
    %v1049 = vpack.c.bf16 %v1003, %v998
    %v1050 = vpack.c.bf16 %v1013, %v1008
    %v1051 = vpack.c.bf16 %v1023, %v1018
    %v1052 = vpack.c.bf16 %v1033, %v1028
    %v1053 = vpack.c.bf16 %v1043, %v1038
    %v1062 = vunpack.c.l.b16 %v1046
    %v1063 = vunpack.c.h.b16 %v1046
    %v1064 = vunpack.c.l.b16 %v1047
    %v1065 = vunpack.c.h.b16 %v1047
    %v1066 = vunpack.c.l.b16 %v1048
    %v1067 = vunpack.c.h.b16 %v1048
    %v1068 = vunpack.c.l.b16 %v1049
    %v1069 = vunpack.c.h.b16 %v1049
    %v1070 = vunpack.c.l.b16 %v1050
    %v1071 = vunpack.c.h.b16 %v1050
    %v1072 = vunpack.c.l.b16 %v1051
    %v1073 = vunpack.c.h.b16 %v1051
    %v1074 = vunpack.c.l.b16 %v1052
    %v1075 = vunpack.c.h.b16 %v1052
    %v1076 = vunpack.c.l.b16 %v1053
    %v1077 = vunpack.c.h.b16 %v1053
    %v1078 = vpack.c.b16 %v1062, %v1062
    %v1079 = vpack.c.b16 %v1063, %v1063
    %v1080 = vpack.c.b16 %v1064, %v1064
    %v1081 = vpack.c.b16 %v1065, %v1065
    %v1082 = vpack.c.b16 %v1066, %v1066
    %v1083 = vpack.c.b16 %v1067, %v1067
    %v1084 = vpack.c.b16 %v1068, %v1068
    %v1085 = vpack.c.b16 %v1069, %v1069
    %v1086 = vpack.c.b16 %v1070, %v1070
    %v1087 = vpack.c.b16 %v1071, %v1071
    %v1088 = vpack.c.b16 %v1072, %v1072
    %v1089 = vpack.c.b16 %v1073, %v1073
    %v1090 = vpack.c.b16 %v1074, %v1074
    %v1091 = vpack.c.b16 %v1075, %v1075
    %v1092 = vpack.c.b16 %v1076, %v1076
    %v1093 = vpack.c.b16 %v1077, %v1077
    %1110 = vst [vmem:[#allocation8] sm:$0xf] %v1078
    %1111 = vst [vmem:[#allocation8 + $0x4] sm:$0xf] %v1079
    %1112 = vst [vmem:[#allocation8 + $0x8] sm:$0xf] %v1080
    %1113 = vst [vmem:[#allocation8 + $0xc] sm:$0xf] %v1081
    %1114 = vst [vmem:[#allocation8 + $0x10] sm:$0xf] %v1082
    %1115 = vst [vmem:[#allocation8 + $0x14] sm:$0xf] %v1083
    %1116 = vst [vmem:[#allocation8 + $0x18] sm:$0xf] %v1084
    %1117 = vst [vmem:[#allocation8 + $0x1c] sm:$0xf] %v1085
    %1118 = vst [vmem:[#allocation8 + $0x20] sm:$0xf] %v1086
    %1119 = vst [vmem:[#allocation8 + $0x24] sm:$0xf] %v1087
    %1120 = vst [vmem:[#allocation8 + $0x28] sm:$0xf] %v1088
    %1121 = vst [vmem:[#allocation8 + $0x2c] sm:$0xf] %v1089
    %1122 = vst [vmem:[#allocation8 + $0x30] sm:$0xf] %v1090
    %1123 = vst [vmem:[#allocation8 + $0x34] sm:$0xf] %v1091
    %1124 = vst [vmem:[#allocation8 + $0x38] sm:$0xf] %v1092
    %1125 = vst [vmem:[#allocation8 + $0x3c] sm:$0xf] %v1093
    %v1126 = vpack.c.bf16 %v865, %v864
    %v1127 = vpack.c.bf16 %v867, %v866
    %v1128 = vpack.c.bf16 %v869, %v868
    %v1129 = vpack.c.bf16 %v871, %v870
    %v1130 = vpack.c.bf16 %v873, %v872
    %v1131 = vpack.c.bf16 %v875, %v874
    %v1132 = vpack.c.bf16 %v877, %v876
    %v1133 = vpack.c.bf16 %v879, %v878
    %v1142 = vunpack.c.l.b16 %v1126
    %v1143 = vunpack.c.h.b16 %v1126
    %v1144 = vunpack.c.l.b16 %v1127
    %v1145 = vunpack.c.h.b16 %v1127
    %v1146 = vunpack.c.l.b16 %v1128
    %v1147 = vunpack.c.h.b16 %v1128
    %v1148 = vunpack.c.l.b16 %v1129
    %v1149 = vunpack.c.h.b16 %v1129
    %v1150 = vunpack.c.l.b16 %v1130
    %v1151 = vunpack.c.h.b16 %v1130
    %v1152 = vunpack.c.l.b16 %v1131
    %v1153 = vunpack.c.h.b16 %v1131
    %v1154 = vunpack.c.l.b16 %v1132
    %v1155 = vunpack.c.h.b16 %v1132
    %v1156 = vunpack.c.l.b16 %v1133
    %v1157 = vunpack.c.h.b16 %v1133
    %v1158 = vpack.c.b16 %v1142, %v1142
    %v1159 = vpack.c.b16 %v1143, %v1143
    %v1160 = vpack.c.b16 %v1144, %v1144
    %v1161 = vpack.c.b16 %v1145, %v1145
    %v1162 = vpack.c.b16 %v1146, %v1146
    %v1163 = vpack.c.b16 %v1147, %v1147
    %v1164 = vpack.c.b16 %v1148, %v1148
    %v1165 = vpack.c.b16 %v1149, %v1149
    %v1166 = vpack.c.b16 %v1150, %v1150
    %v1167 = vpack.c.b16 %v1151, %v1151
    %v1168 = vpack.c.b16 %v1152, %v1152
    %v1169 = vpack.c.b16 %v1153, %v1153
    %v1170 = vpack.c.b16 %v1154, %v1154
    %v1171 = vpack.c.b16 %v1155, %v1155
    %v1172 = vpack.c.b16 %v1156, %v1156
    %v1173 = vpack.c.b16 %v1157, %v1157
    %1190 = vst [vmem:[#allocation9] sm:$0xf] %v1158
    %1191 = vst [vmem:[#allocation9 + $0x4] sm:$0xf] %v1159
    %1192 = vst [vmem:[#allocation9 + $0x8] sm:$0xf] %v1160
    %1193 = vst [vmem:[#allocation9 + $0xc] sm:$0xf] %v1161
    %1194 = vst [vmem:[#allocation9 + $0x10] sm:$0xf] %v1162
    %1195 = vst [vmem:[#allocation9 + $0x14] sm:$0xf] %v1163
    %1196 = vst [vmem:[#allocation9 + $0x18] sm:$0xf] %v1164
    %1197 = vst [vmem:[#allocation9 + $0x1c] sm:$0xf] %v1165
    %1198 = vst [vmem:[#allocation9 + $0x20] sm:$0xf] %v1166
    %1199 = vst [vmem:[#allocation9 + $0x24] sm:$0xf] %v1167
    %1200 = vst [vmem:[#allocation9 + $0x28] sm:$0xf] %v1168
    %1201 = vst [vmem:[#allocation9 + $0x2c] sm:$0xf] %v1169
    %1202 = vst [vmem:[#allocation9 + $0x30] sm:$0xf] %v1170
    %1203 = vst [vmem:[#allocation9 + $0x34] sm:$0xf] %v1171
    %1204 = vst [vmem:[#allocation9 + $0x38] sm:$0xf] %v1172
    %1205 = vst [vmem:[#allocation9 + $0x3c] sm:$0xf] %v1173
    // Predicated region
    $region26: #{tpu_custom_call.1} parent=1 // pred_check
      _
    $region27: #{tpu_custom_call.1} parent=1 // pred_check_branch
      %1207 = sbr.rel (0) target = $region29
    $region28: #{tpu_custom_call.1} parent=1 // pred_region
      %s1209 = ssub.s32 1024, 1024
      %1210 = vsyncadd [#allocation4], %s1209
      %s1211 = sshll.u32 [#allocation8], 4
      %s1212 = int_to_ptr.vmem [resolvable:$true] %s1211
      %1217 = dma.vmem_to_hbm [thread:$0]  %s1212, 1024, %s3, [#allocation4], 64, 64, 4
    $region29: #{tpu_custom_call.1} parent=1 // pred_fallthru
      _
    // Predicated region
    $region30: #{tpu_custom_call.1} parent=1 // pred_check
      _
    $region31: #{tpu_custom_call.1} parent=1 // pred_check_branch
      %1219 = sbr.rel (0) target = $region33
    $region32: #{tpu_custom_call.1} parent=1 // pred_region
      %s1221 = ssub.s32 1024, 1024
      %1222 = vsyncadd [#allocation10], %s1221
      %s1223 = sshll.u32 [#allocation9], 4
      %s1224 = int_to_ptr.vmem [resolvable:$true] %s1223
      %1229 = dma.vmem_to_hbm [thread:$0]  %s1224, 1024, %s4, [#allocation10], 64, 64, 4
    $region33: #{tpu_custom_call.1} parent=1 // pred_fallthru
      _
    // Predicated region
    $region34: #{tpu_custom_call.1} parent=1 // pred_check
      _
    $region35: #{tpu_custom_call.1} parent=1 // pred_check_branch
      %1231 = sbr.rel (0) target = $region37
    $region36: #{tpu_custom_call.1} parent=1 // pred_region
      %1232 = dma.done [#allocation4], 1024
    $region37: #{tpu_custom_call.1} parent=1 // pred_fallthru
      _
    // Predicated region
    $region38: #{tpu_custom_call.1} parent=1 // pred_check
      _
    $region39: #{tpu_custom_call.1} parent=1 // pred_check_branch
      %1234 = sbr.rel (0) target = $region41
    $region40: #{tpu_custom_call.1} parent=1 // pred_region
      %1235 = dma.done [#allocation10], 1024
    $region41: #{tpu_custom_call.1} parent=1 // pred_fallthru
      _
    %1236 = vsyncpa [#allocation3], 1
    %1237 = vsyncpa [#allocation6], 1
    %1238 = vsyncpa [#allocation4], 1
    %1239 = vsyncpa [#allocation10], 1

</llo_original>
